<compile_context>
chip_gen: v5e
topology: v5e:2x2
jax: 0.10.0
libtpu: 0.0.40
codegen_flags: <defaults>
</compile_context>

<pallas_src>
import math

import numpy as np
import jax
import jax.numpy as jnp
from jax.experimental import pallas as pl
from jax.experimental.pallas import tpu as pltpu


# ---------------------------------------------------------------------------
# Parameter construction (mirrors SkeletonConv.__init__ / reset_parameters)
# ---------------------------------------------------------------------------
def create_expanded_neighbor_list(neighbor_list, in_channels_per_joint):
    expanded_neighbor_list = []
    for neighbor in neighbor_list:
        expanded = []
        for k in neighbor:
            for i in range(in_channels_per_joint):
                expanded.append(k * in_channels_per_joint + i)
        expanded_neighbor_list.append(expanded)
    return expanded_neighbor_list


def init_skeleton_conv_params(key, neighbor_list, kernel_size,
                              in_channels_per_joint, out_channels_per_joint,
                              in_joint_num, out_joint_num):
    """Deterministic init reproducing the structure of reset_parameters():
    per-joint kaiming_uniform(a=sqrt(5)) weight blocks, uniform bias with
    bound 1/sqrt(fan_in), and a 0/1 mask over the neighbor pattern."""
    in_channels = in_channels_per_joint * in_joint_num
    out_channels = out_channels_per_joint * out_joint_num
    expanded = create_expanded_neighbor_list(neighbor_list, in_channels_per_joint)

    weight = np.zeros((out_channels, in_channels, kernel_size), np.float32)
    mask = np.zeros((out_channels, in_channels, kernel_size), np.float32)
    bias = np.zeros((out_channels,), np.float32)

    for i, exp_nb in enumerate(expanded):
        key, kw, kb = jax.random.split(key, 3)
        o0, o1 = out_channels_per_joint * i, out_channels_per_joint * (i + 1)

        for j in neighbor_list[i]:
            mask[o0:o1,
                 j * in_channels_per_joint:(j + 1) * in_channels_per_joint,
                 :] = 1.0

        # kaiming_uniform_(a=sqrt(5)):  bound = 1/sqrt(fan_in)
        fan_in = len(exp_nb) * kernel_size
        bound = 1.0 / math.sqrt(fan_in)
        tmp = np.asarray(jax.random.uniform(
            kw, (out_channels_per_joint, len(exp_nb), kernel_size),
            minval=-bound, maxval=bound, dtype=jnp.float32))
        weight[o0:o1, np.asarray(exp_nb, dtype=np.int64), :] = tmp

        b_tmp = np.asarray(jax.random.uniform(
            kb, (out_channels_per_joint,),
            minval=-bound, maxval=bound, dtype=jnp.float32))
        bias[o0:o1] = b_tmp

    return jnp.asarray(weight), jnp.asarray(mask), jnp.asarray(bias)


# ---------------------------------------------------------------------------
# Pallas kernel: in-kernel im2col (slab assembly) + one MXU matmul per batch
# ---------------------------------------------------------------------------
def _round_up(x, m):
    return ((x + m - 1) // m) * m


def _make_kernel(k_size, stride, c_in_p, l_out_pad):
    def kernel(x_ref, w_ref, b_ref, o_ref, slab_ref):
        # x_ref   : (C_in_p, L_in_pad)    compute dtype  (batch dim squeezed)
        # w_ref   : (C_out_p, K*C_in_p)   compute dtype  (pre-masked, resident)
        # b_ref   : (C_out_p, 1)          f32            (resident)
        # o_ref   : (C_out_p, L_out_pad)  out dtype      (batch dim squeezed)
        # slab_ref: (K*C_in_p, L_out_pad) compute dtype  (VMEM scratch)
        for k in range(k_size):               # static, unrolled (K is small)
            if stride == 1:
                win = x_ref[:, pl.ds(k, l_out_pad)]
            else:
                win = x_ref[:, pl.ds(k, l_out_pad, stride)]
            slab_ref[k * c_in_p:(k + 1) * c_in_p, :] = win
        acc = jnp.dot(w_ref[...], slab_ref[...],
                      preferred_element_type=jnp.float32)
        o_ref[...] = (acc + b_ref[...]).astype(o_ref.dtype)
    return kernel


def skeleton_conv_forward(x, weight, mask, bias, *, padding, stride,
                          compute_dtype=jnp.bfloat16, out_dtype=None):
    """x: (N, C_in, L) -> (N, C_out, L_out).  Same semantics as
    F.conv1d(F.pad(x, (padding, padding), mode='reflect'),
             weight * mask, bias, stride)."""
    n, c_in, length = x.shape
    c_out, _, k_size = weight.shape
    assert padding < length, "reflect padding requires padding < length"
    out_dtype = x.dtype if out_dtype is None else out_dtype

    l_out = (length + 2 * padding - k_size) // stride + 1
    assert l_out >= 1

    quantum = 16 if compute_dtype == jnp.bfloat16 else 8
    c_in_p = _round_up(c_in, quantum)
    c_out_p = _round_up(c_out, quantum)
    kc = k_size * c_in_p
    l_out_pad = _round_up(max(l_out, 128), 128)      # lane-dense output stores

    l_pad_phys = length + 2 * padding
    # last column touched inside the kernel: (k_size-1) + (l_out_pad-1)*stride
    l_in_pad = max(l_pad_phys, k_size + (l_out_pad - 1) * stride)

    # ---------------- glue (cast + pad only; no im2col, no transposes) -------
    xc = x.astype(compute_dtype)
    x_pad = jnp.pad(xc, ((0, 0), (0, 0), (padding, padding)), mode="reflect")
    x_pad = jnp.pad(x_pad, ((0, 0), (0, c_in_p - c_in),
                            (0, l_in_pad - l_pad_phys)))

    # fold the constant mask into the weight once; flatten so that
    # w_flat[o, k*C_in_p + c] == (weight*mask)[o, c, k]
    w_masked = (weight * mask).astype(jnp.float32)
    w_p = jnp.zeros((c_out_p, c_in_p, k_size), jnp.float32)
    w_p = w_p.at[:c_out, :c_in, :].set(w_masked)
    w_flat = jnp.transpose(w_p, (0, 2, 1)).reshape(c_out_p, kc)
    w_flat = w_flat.astype(compute_dtype)

    b_p = jnp.zeros((c_out_p, 1), jnp.float32)
    b_p = b_p.at[:c_out, 0].set(bias.astype(jnp.float32))

    # ---------------- pallas_call --------------------------------------------
    csize = jnp.dtype(compute_dtype).itemsize
    osize = jnp.dtype(out_dtype).itemsize
    cost = pl.CostEstimate(
        flops=2 * n * c_out_p * kc * l_out_pad,
        transcendentals=0,
        bytes_accessed=(n * c_in_p * l_in_pad * csize      # input halo tiles
                        + c_out_p * kc * csize             # weights (once)
                        + n * c_out_p * l_out_pad * osize  # output
                        + c_out_p * 4))                    # bias

    # per-step VMEM: double-buffered x/out blocks, resident weight/bias, slab
    vmem_needed = (2 * c_in_p * l_in_pad * csize
                   + 2 * c_out_p * l_out_pad * osize
                   + 2 * c_out_p * kc * csize
                   + kc * l_out_pad * csize
                   + 2 * c_out_p * 4)
    vmem_limit = int(max(32 * 2**20, min(2 * vmem_needed + (4 << 20),
                                         120 * 2**20)))

    kernel = _make_kernel(k_size, stride, c_in_p, l_out_pad)

    out_pad = pl.pallas_call(
        kernel,
        out_shape=jax.ShapeDtypeStruct((n, c_out_p, l_out_pad), out_dtype),
        grid_spec=pltpu.PrefetchScalarGridSpec(
            num_scalar_prefetch=0,
            grid=(n,),
            in_specs=[
                pl.BlockSpec((None, c_in_p, l_in_pad), lambda b: (b, 0, 0)),
                pl.BlockSpec((c_out_p, kc), lambda b: (0, 0)),   # resident
                pl.BlockSpec((c_out_p, 1), lambda b: (0, 0)),    # resident
            ],
            out_specs=pl.BlockSpec((None, c_out_p, l_out_pad),
                                   lambda b: (b, 0, 0)),
            scratch_shapes=[pltpu.VMEM((kc, l_out_pad), compute_dtype)],
        ),
        compiler_params=pltpu.CompilerParams(
            dimension_semantics=("parallel",),
            vmem_limit_bytes=vmem_limit),
        cost_estimate=cost,
    )(x_pad, w_flat, b_p)

    # de-pad (cheap slice; output is already in final (N, C_out, L_out) layout)
    return out_pad[:, :c_out, :l_out]


# pure-JAX reference for verification
def skeleton_conv_reference(x, weight, mask, bias, *, padding, stride):
    x_pad = jnp.pad(x, ((0, 0), (0, 0), (padding, padding)), mode="reflect")
    wm = weight * mask
    out = jax.lax.conv_general_dilated(
        x_pad, wm, window_strides=(stride,), padding="VALID",
        dimension_numbers=("NCH", "OIH", "NCH"))
    return out + bias[None, :, None]


if __name__ == "__main__":
    # small, self-consistent config
    neighbor_list = [[0, 1], [0, 1, 2], [1, 2, 3], [2, 3]]
    in_joint_num = 4
    out_joint_num = 4
    in_channels_per_joint = 4
    out_channels_per_joint = 8
    kernel_size = 3
    batch = 2
    seq_len = 16

    key = jax.random.PRNGKey(0)
    k_param, k_x = jax.random.split(key)

    weight, mask, bias = init_skeleton_conv_params(
        k_param, neighbor_list, kernel_size,
        in_channels_per_joint, out_channels_per_joint,
        in_joint_num, out_joint_num)

    c_in = in_channels_per_joint * in_joint_num
    x = jax.random.normal(k_x, (batch, c_in, seq_len), dtype=jnp.float32)

    # f32 compute path: tight check, stride 1 and stride 2
    for stride, padding in [(1, 1), (2, 1)]:
        out = skeleton_conv_forward(x, weight, mask, bias,
                                    padding=padding, stride=stride,
                                    compute_dtype=jnp.float32)
        out = jax.block_until_ready(out)
        ref = skeleton_conv_reference(x, weight, mask, bias,
                                      padding=padding, stride=stride)
        assert out.shape == ref.shape, (out.shape, ref.shape)
        assert jnp.allclose(out, ref, atol=1e-4, rtol=1e-4), \
            f"f32 mismatch vs reference (stride={stride})"

    # default bf16 fast path: bf16 operands, f32 accumulation, f32 output
    for stride, padding in [(1, 1), (2, 1)]:
        out_bf16 = skeleton_conv_forward(x, weight, mask, bias,
                                         padding=padding, stride=stride)
        out_bf16 = jax.block_until_ready(out_bf16)
        ref = skeleton_conv_reference(x, weight, mask, bias,
                                      padding=padding, stride=stride)
        assert out_bf16.shape == ref.shape
        assert jnp.allclose(out_bf16, ref, atol=5e-2, rtol=5e-2), \
            f"bf16 mismatch vs reference (stride={stride})"

    print("KERNEL_OK")
</pallas_src>

<mosaic_0001>
module attributes {stable_mosaic.version = 11 : i64} {
  func.func @kernel(%arg0: i32, %arg1: memref<1x16x130xf32, #tpu.memory_space<vmem>>, %arg2: memref<32x48xf32, #tpu.memory_space<vmem>>, %arg3: memref<32x1xf32, #tpu.memory_space<vmem>>, %arg4: memref<1x32x128xf32, #tpu.memory_space<vmem>>, %arg5: memref<48x128xf32, #tpu.memory_space<vmem>>) attributes {dimension_semantics = [#tpu.dimension_semantics<parallel>], iteration_bounds = array<i64: 2>, scalar_prefetch = 0 : i64, scratch_operands = 1 : i64, tpu.core_type = #tpu.core_type<tc>, window_params = [{transform_indices = @transform_0, window_bounds = array<i64: 1, 16, 130>}, {pipeline_mode = #tpu.pipeline_mode<synchronous>, transform_indices = @transform_1, window_bounds = array<i64: 32, 48>}, {pipeline_mode = #tpu.pipeline_mode<synchronous>, transform_indices = @transform_2, window_bounds = array<i64: 32, 1>}, {transform_indices = @transform_3, window_bounds = array<i64: 1, 32, 128>}]} {
    %c0 = arith.constant 0 : index
    %c0_0 = arith.constant 0 : index
    %c0_1 = arith.constant 0 : index
    %0 = vector.load %arg1[%c0, %c0_0, %c0_1] : memref<1x16x130xf32, #tpu.memory_space<vmem>>, vector<1x16x128xf32>
    %1 = vector.shape_cast %0 : vector<1x16x128xf32> to vector<16x128xf32>
    %c0_2 = arith.constant 0 : index
    %c0_3 = arith.constant 0 : index
    %2 = vector.load %arg5[%c0_2, %c0_3] : memref<48x128xf32, #tpu.memory_space<vmem>>, vector<16x128xf32>
    tpu.vector_store %arg5[%c0_2, %c0_3], %1 {strides = array<i32>} : memref<48x128xf32, #tpu.memory_space<vmem>>, vector<16x128xf32>,
    %c0_4 = arith.constant 0 : index
    %c0_5 = arith.constant 0 : index
    %c1 = arith.constant 1 : index
    %3 = vector.load %arg1[%c0_4, %c0_5, %c1] : memref<1x16x130xf32, #tpu.memory_space<vmem>>, vector<1x16x128xf32>
    %4 = vector.shape_cast %3 : vector<1x16x128xf32> to vector<16x128xf32>
    %c16 = arith.constant 16 : index
    %c0_6 = arith.constant 0 : index
    %5 = vector.load %arg5[%c16, %c0_6] : memref<48x128xf32, #tpu.memory_space<vmem>>, vector<16x128xf32>
    tpu.vector_store %arg5[%c16, %c0_6], %4 {strides = array<i32>} : memref<48x128xf32, #tpu.memory_space<vmem>>, vector<16x128xf32>,
    %c0_7 = arith.constant 0 : index
    %c0_8 = arith.constant 0 : index
    %c2 = arith.constant 2 : index
    %6 = vector.load %arg1[%c0_7, %c0_8, %c2] : memref<1x16x130xf32, #tpu.memory_space<vmem>>, vector<1x16x128xf32>
    %7 = vector.shape_cast %6 : vector<1x16x128xf32> to vector<16x128xf32>
    %c32 = arith.constant 32 : index
    %c0_9 = arith.constant 0 : index
    %8 = vector.load %arg5[%c32, %c0_9] : memref<48x128xf32, #tpu.memory_space<vmem>>, vector<16x128xf32>
    tpu.vector_store %arg5[%c32, %c0_9], %7 {strides = array<i32>} : memref<48x128xf32, #tpu.memory_space<vmem>>, vector<16x128xf32>,
    %c0_10 = arith.constant 0 : index
    %c0_11 = arith.constant 0 : index
    %9 = vector.load %arg2[%c0_10, %c0_11] : memref<32x48xf32, #tpu.memory_space<vmem>>, vector<32x48xf32>
    %c0_12 = arith.constant 0 : index
    %c0_13 = arith.constant 0 : index
    %10 = vector.load %arg5[%c0_12, %c0_13] : memref<48x128xf32, #tpu.memory_space<vmem>>, vector<48x128xf32>
    %cst = arith.constant dense<0.000000e+00> : vector<32x128xf32>
    %11 = tpu.matmul %9, %10, %cst {dimension_numbers = #tpu.dot_dimension_numbers<[1], [0], [0], [1], [0, 0, 1, 1], [], []>} : vector<32x48xf32>, vector<48x128xf32>, vector<32x128xf32> -> vector<32x128xf32>
    %c0_14 = arith.constant 0 : index
    %c0_15 = arith.constant 0 : index
    %12 = vector.load %arg3[%c0_14, %c0_15] : memref<32x1xf32, #tpu.memory_space<vmem>>, vector<32x1xf32>
    %13 = vector.broadcast %12 : vector<32x1xf32> to vector<32x128xf32>
    %14 = arith.addf %11, %13 : vector<32x128xf32>
    %c0_16 = arith.constant 0 : index
    %c0_17 = arith.constant 0 : index
    %c0_18 = arith.constant 0 : index
    %15 = vector.load %arg4[%c0_16, %c0_17, %c0_18] : memref<1x32x128xf32, #tpu.memory_space<vmem>>, vector<1x32x128xf32>
    %16 = vector.shape_cast %15 : vector<1x32x128xf32> to vector<32x128xf32>
    %17 = vector.shape_cast %14 : vector<32x128xf32> to vector<1x32x128xf32>
    tpu.vector_store %arg4[%c0_16, %c0_17, %c0_18], %17 {strides = array<i32>} : memref<1x32x128xf32, #tpu.memory_space<vmem>>, vector<1x32x128xf32>,
    return
  }
  func.func @transform_0(%arg0: i32) -> (i32, i32, i32) {
    %c0_i32 = arith.constant 0 : i32
    %c0_i32_0 = arith.constant 0 : i32
    %c0_i32_1 = arith.constant 0 : i32
    return %arg0, %c0_i32, %c0_i32_0 : i32, i32, i32
  }
  func.func @transform_1(%arg0: i32) -> (i32, i32) {
    %c0_i32 = arith.constant 0 : i32
    %c0_i32_0 = arith.constant 0 : i32
    %c0_i32_1 = arith.constant 0 : i32
    return %c0_i32, %c0_i32_0 : i32, i32
  }
  func.func @transform_2(%arg0: i32) -> (i32, i32) {
    %c0_i32 = arith.constant 0 : i32
    %c0_i32_0 = arith.constant 0 : i32
    %c0_i32_1 = arith.constant 0 : i32
    return %c0_i32, %c0_i32_0 : i32, i32
  }
  func.func @transform_3(%arg0: i32) -> (i32, i32, i32) {
    %c0_i32 = arith.constant 0 : i32
    %c0_i32_0 = arith.constant 0 : i32
    %c0_i32_1 = arith.constant 0 : i32
    return %arg0, %c0_i32, %c0_i32_0 : i32, i32, i32
  }
}

</mosaic_0001>

<llo_original>
// kernel: tpu_custom_call.1
$region0: #{tpu_custom_call.1}
  #allocation0 [shape = 'u32[]', space=smem, size = 0x4, offset = 0x4, fixed_abs, tag = 'smem constant byte address 0x4 - core index']
  #allocation1 [shape = 'u32[72,128]{1,0:T(1,128)}', space=vmem, size = 0x9000, scoped, tag = 'internal scratch']
  #allocation2 [shape = 'f32[48,128]{1,0:T(8,128)}', space=vmem, size = 0x6000, scoped, tag = 'scratch operand']
  %s0 = inlined_call_operand.hbm [shape: f32[2,16,130], index: 0, kind: input, shape index: {}]
  %s1 = inlined_call_operand.vmem [shape: f32[32,48], index: 1, kind: input, shape index: {}]
  %s2 = inlined_call_operand.vmem [shape: f32[32,1], index: 2, kind: input, shape index: {}]
  %s3 = inlined_call_operand.hbm [shape: f32[2,32,128], index: 3, kind: output, shape index: {}]
  %s4 = sld [smem:[#allocation0]]
  $region49: #{tpu_custom_call.1} parent=0
    _
  %s6 = ssub.s32 1, %s4
  %s7 = scalar_select 0, %s6, %s4
  $region1: #{tpu_custom_call.1} parent=0
    #allocation3 [shape = 'u8[32768]{0}', space=vmem, size = 0x8000, scoped, tag = 'input window, operand 0']
    #allocation4 [shape = 's32[2]{0}', space=sflag, size = 0x8, scoped, tag = 'scoped memory for tpu_custom_call.1']
    #allocation5 [shape = 's32[2]{0}', space=sflag, size = 0x8, scoped, tag = 'scoped memory for tpu_custom_call.1']
    #allocation6 [shape = 'u8[32768]{0}', space=vmem, size = 0x8000, scoped, tag = 'output window, operand 0']
    %8 = vsyncpa [#allocation4], 0
    %s9 = scalar_lea.sflag [#allocation4], 1
    %10 = vsyncpa %s9, 0
    %11 = vsyncpa [#allocation5], 0
    %s12 = scalar_lea.sflag [#allocation5], 1
    %13 = vsyncpa %s12, 0
    loop: start=0, step=1, limit=4
    $region2: #{tpu_custom_call.1} parent=1 // loop_pre_header
      _
    $region3: #{tpu_custom_call.1} parent=1 // loop_header
      %s15 = sphi 0, %s19
      %p16 = scmp.ge.s32.totalorder %s15, 4
      %s25 = sphi 0, %s27
      %s28 = sphi 0, %s25
      %s29 = sphi 0, %s28
      %s45 = sphi 0, %s29
      %s49 = sphi 0, %s49
      %s51 = sphi 0, %s49
      %s52 = sphi 0, %s51
      %s66 = sphi 0, %s52
      %s70 = sphi 0, %s70
      %s72 = sphi 0, %s70
      %s73 = sphi 0, %s72
      %s87 = sphi 0, %s73
      %s93 = sphi 0, %s95
      %s96 = sphi 0, %s93
      %s97 = sphi 0, %s96
      %s113 = sphi 0, %s97
    $region4: #{tpu_custom_call.1} parent=1 // loop_header_branch
      %18 = sbr.rel (%p16) target = $region8
    $region5: #{tpu_custom_call.1} parent=1 // loop_body
      %s20 = ssub.s32 %s15, 1
      %s21 = ssub.s32 %s15, 2
      %s22 = sadd.s32 %s15, 1
      %s23 = ssub.s32 %s15, %s22
      %p24 = scmp.eq.s32.totalorder %s23, 0
      %s26 = sadd.s32 %s25, 1
      %s27 = scalar_select %p24, %s25, %s26
      %p30 = pneg %p24
      %p31 = scmp.eq.s32.totalorder %s15, 1
      %p32 = por %p30, %p31
      %p33 = scmp.ne.s32.totalorder %s25, %s28
      %p34 = scmp.eq.s32.totalorder %s15, 0
      %p35 = por %p33, %p34
      %p36 = scmp.ne.s32.totalorder %s25, %s28
      %p37 = scmp.eq.s32.totalorder %s20, 1
      %p38 = por %p36, %p37
      %p39 = scmp.ne.s32.totalorder %s28, %s29
      %p40 = scmp.eq.s32.totalorder %s20, 0
      %p41 = por %p39, %p40
      %p42 = scmp.ne.s32.totalorder %s28, %s29
      %p43 = scmp.eq.s32.totalorder %s21, 1
      %p44 = por %p42, %p43
      %p46 = scmp.ne.s32.totalorder %s29, %s45
      %p47 = scmp.eq.s32.totalorder %s21, 0
      %p48 = por %p46, %p47
      %s50 = sadd.s32 %s49, 1
      %p53 = scmp.eq.s32.totalorder %s15, 1
      %p54 = scmp.ne.s32.totalorder %s49, %s51
      %p55 = scmp.eq.s32.totalorder %s15, 0
      %p56 = por %p54, %p55
      %p57 = scmp.ne.s32.totalorder %s49, %s51
      %p58 = scmp.eq.s32.totalorder %s20, 1
      %p59 = por %p57, %p58
      %p60 = scmp.ne.s32.totalorder %s51, %s52
      %p61 = scmp.eq.s32.totalorder %s20, 0
      %p62 = por %p60, %p61
      %p63 = scmp.ne.s32.totalorder %s51, %s52
      %p64 = scmp.eq.s32.totalorder %s21, 1
      %p65 = por %p63, %p64
      %p67 = scmp.ne.s32.totalorder %s52, %s66
      %p68 = scmp.eq.s32.totalorder %s21, 0
      %p69 = por %p67, %p68
      %s71 = sadd.s32 %s70, 1
      %p74 = scmp.eq.s32.totalorder %s15, 1
      %p75 = scmp.ne.s32.totalorder %s70, %s72
      %p76 = scmp.eq.s32.totalorder %s15, 0
      %p77 = por %p75, %p76
      %p78 = scmp.ne.s32.totalorder %s70, %s72
      %p79 = scmp.eq.s32.totalorder %s20, 1
      %p80 = por %p78, %p79
      %p81 = scmp.ne.s32.totalorder %s72, %s73
      %p82 = scmp.eq.s32.totalorder %s20, 0
      %p83 = por %p81, %p82
      %p84 = scmp.ne.s32.totalorder %s72, %s73
      %p85 = scmp.eq.s32.totalorder %s21, 1
      %p86 = por %p84, %p85
      %p88 = scmp.ne.s32.totalorder %s73, %s87
      %p89 = scmp.eq.s32.totalorder %s21, 0
      %p90 = por %p88, %p89
      %s91 = ssub.s32 %s15, %s22
      %p92 = scmp.eq.s32.totalorder %s91, 0
      %s94 = sadd.s32 %s93, 1
      %s95 = scalar_select %p92, %s93, %s94
      %p98 = pneg %p92
      %p99 = scmp.eq.s32.totalorder %s15, 1
      %p100 = por %p98, %p99
      %p101 = scmp.ne.s32.totalorder %s93, %s96
      %p102 = scmp.eq.s32.totalorder %s15, 0
      %p103 = por %p101, %p102
      %p104 = scmp.ne.s32.totalorder %s93, %s96
      %p105 = scmp.eq.s32.totalorder %s20, 1
      %p106 = por %p104, %p105
      %p107 = scmp.ne.s32.totalorder %s96, %s97
      %p108 = scmp.eq.s32.totalorder %s20, 0
      %p109 = por %p107, %p108
      %p110 = scmp.ne.s32.totalorder %s96, %s97
      %p111 = scmp.eq.s32.totalorder %s21, 1
      %p112 = por %p110, %p111
      %p114 = scmp.ne.s32.totalorder %s97, %s113
      %p115 = scmp.eq.s32.totalorder %s21, 0
      %p116 = por %p114, %p115
      %p117 = scmp.le.s32.totalorder 1, %s15
      %p118 = scmp.lt.s32.totalorder %s15, 3
      %p119 = pnand %p117, %p118
      %p120 = pneg %p119
      // Predicated region
      $region9: #{tpu_custom_call.1} parent=5 // pred_check
        _
      $region10: #{tpu_custom_call.1} parent=5 // pred_check_branch
        %122 = sbr.rel (%p119) target = $region12
      $region11: #{tpu_custom_call.1} parent=5 // pred_region
        %s123 = ssub.s32 %s15, 1
        // Predicated region
        $region13: #{tpu_custom_call.1} parent=11 // pred_check
          %p124 = pneg %p62
        $region14: #{tpu_custom_call.1} parent=11 // pred_check_branch
          %126 = sbr.rel (%p124) target = $region16
        $region15: #{tpu_custom_call.1} parent=11 // pred_region
          _
        $region16: #{tpu_custom_call.1} parent=11 // pred_fallthru
          _
        // Predicated region
        $region17: #{tpu_custom_call.1} parent=11 // pred_check
          %p127 = pneg %p83
        $region18: #{tpu_custom_call.1} parent=11 // pred_check_branch
          %129 = sbr.rel (%p127) target = $region20
        $region19: #{tpu_custom_call.1} parent=11 // pred_region
          _
        $region20: #{tpu_custom_call.1} parent=11 // pred_fallthru
          _
      $region12: #{tpu_custom_call.1} parent=5 // pred_fallthru
        _
      %p130 = scmp.lt.s32.totalorder %s15, 2
      // Predicated region
      $region21: #{tpu_custom_call.1} parent=5 // pred_check
        %p131 = pneg %p130
      $region22: #{tpu_custom_call.1} parent=5 // pred_check_branch
        %133 = sbr.rel (%p131) target = $region24
      $region23: #{tpu_custom_call.1} parent=5 // pred_region
        // Predicated region
        $region25: #{tpu_custom_call.1} parent=23 // pred_check
          %p134 = pneg %p35
        $region26: #{tpu_custom_call.1} parent=23 // pred_check_branch
          %136 = sbr.rel (%p134) target = $region28
        $region27: #{tpu_custom_call.1} parent=23 // pred_region
          %s137 = sand.u32 %s25, 1
          %s138 = scalar_lea.sflag [#allocation4], %s137
          %s139 = sand.u32 %s25, 1
          %s140 = smul.addr %s139, 32
          %s141 = scalar_lea.vmem [#allocation3], %s140
          %143 = vsyncadd %s138, 0
          %s144 = smul.addr %s15, 4
          %s145 = smul.addr %s144, 8
          %s146 = scalar_lea.hbm %s0, %s145
          %s147 = sshll.u32 %s146, 4
          %s148 = int_to_ptr.hbm [resolvable:$true] %s147
          %s149 = sshll.u32 %s141, 4
          %s150 = int_to_ptr.vmem [resolvable:$true] %s149
          %155 = dma.hbm_to_vmem [thread:$0]  %s148, 512, %s150, %s138, 256, 256, 16
        $region28: #{tpu_custom_call.1} parent=23 // pred_fallthru
          _
      $region24: #{tpu_custom_call.1} parent=5 // pred_fallthru
        _
      %p156 = scmp.le.s32.totalorder 1, %s15
      %p157 = scmp.lt.s32.totalorder %s15, 3
      %p158 = pnand %p156, %p157
      %p159 = pneg %p158
      // Predicated region
      $region29: #{tpu_custom_call.1} parent=5 // pred_check
        _
      $region30: #{tpu_custom_call.1} parent=5 // pred_check_branch
        %161 = sbr.rel (%p158) target = $region32
      $region31: #{tpu_custom_call.1} parent=5 // pred_region
        %s162 = ssub.s32 %s15, 1
        %s163 = sand.u32 %s28, 1
        %s164 = scalar_lea.sflag [#allocation4], %s163
        %s165 = sand.u32 %s28, 1
        %s166 = smul.addr %s165, 32
        %s167 = scalar_lea.vmem [#allocation3], %s166
        // Predicated region
        $region33: #{tpu_custom_call.1} parent=31 // pred_check
          %p168 = pneg %p41
        $region34: #{tpu_custom_call.1} parent=31 // pred_check_branch
          %170 = sbr.rel (%p168) target = $region36
        $region35: #{tpu_custom_call.1} parent=31 // pred_region
          %172 = dma.done %s164, 512
        $region36: #{tpu_custom_call.1} parent=31 // pred_fallthru
          _
        %s173 = sand.u32 %s28, 1
        %s174 = scalar_lea.sflag [#allocation4], %s173
        %s175 = sand.u32 %s28, 1
        %s176 = smul.addr %s175, 32
        %s177 = scalar_lea.vmem [#allocation3], %s176
        %p178 = pneg %p41
        %p179 = pneg %p38
        %p180 = pneg %p62
        %p181 = pneg %p59
        %p182 = pneg %p83
        %p183 = pneg %p80
        %p184 = pneg %p109
        %p185 = pneg %p106
        %s186 = sand.u32 %s96, 1
        %s187 = scalar_lea.sflag [#allocation5], %s186
        %s188 = sand.u32 %s96, 1
        %s189 = smul.addr %s188, 32
        %s190 = scalar_lea.vmem [#allocation6], %s189
        %v191 = vld [vmem:[%s167] sm:$0xff]
        %v192 = vld [vmem:[%s167 + $0x10] sm:$0xff]
        %193 = vst [vmem:[#allocation2] sm:$0xff] %v191
        %194 = vst [vmem:[#allocation2 + $0x8] sm:$0xff] %v192
        %v195 = vld [vmem:[%s167] sm:$0xff]
        %v196 = vld [vmem:[%s167 + $0x8] sm:$0xff]
        %v197 = vld [vmem:[%s167 + $0x10] sm:$0xff]
        %v198 = vld [vmem:[%s167 + $0x18] sm:$0xff]
        %203 = vrot.lane.b32.xlu0 %v195, 127
        %v204 = vpop.permute.xlu0 %203
        %205 = vrot.lane.b32.xlu0 %v196, 127
        %v206 = vpop.permute.xlu0 %205
        %207 = vrot.lane.b32.xlu0 %v197, 127
        %v208 = vpop.permute.xlu0 %207
        %209 = vrot.lane.b32.xlu0 %v198, 127
        %v210 = vpop.permute.xlu0 %209
        %vm211 = vcmask 1039360
        %v212 = vsel %vm211, %v204, %v206
        %v213 = vsel %vm211, %v208, %v210
        %216 = vst [vmem:[#allocation2 + $0x10] sm:$0xff] %v212
        %217 = vst [vmem:[#allocation2 + $0x18] sm:$0xff] %v213
        %v218 = vld [vmem:[%s167] sm:$0xff]
        %v219 = vld [vmem:[%s167 + $0x8] sm:$0xff]
        %v220 = vld [vmem:[%s167 + $0x10] sm:$0xff]
        %v221 = vld [vmem:[%s167 + $0x18] sm:$0xff]
        %226 = vrot.lane.b32.xlu0 %v218, 126
        %v227 = vpop.permute.xlu0 %226
        %228 = vrot.lane.b32.xlu0 %v219, 126
        %v229 = vpop.permute.xlu0 %228
        %230 = vrot.lane.b32.xlu0 %v220, 126
        %v231 = vpop.permute.xlu0 %230
        %232 = vrot.lane.b32.xlu0 %v221, 126
        %v233 = vpop.permute.xlu0 %232
        %vm234 = vcmask 1031168
        %v235 = vsel %vm234, %v227, %v229
        %v236 = vsel %vm234, %v231, %v233
        %239 = vst [vmem:[#allocation2 + $0x20] sm:$0xff] %v235
        %240 = vst [vmem:[#allocation2 + $0x28] sm:$0xff] %v236
        %v241 = vld [vmem:[%s1] sm:$0xff]
        %v242 = vld [vmem:[%s1 + $0x8] sm:$0xff]
        %v243 = vld [vmem:[%s1 + $0x10] sm:$0xff]
        %v244 = vld [vmem:[%s1 + $0x18] sm:$0xff]
        %v245 = vld [vmem:[#allocation2] sm:$0xff]
        %v246 = vld [vmem:[#allocation2 + $0x8] sm:$0xff]
        %v247 = vld [vmem:[#allocation2 + $0x10] sm:$0xff]
        %v248 = vld [vmem:[#allocation2 + $0x18] sm:$0xff]
        %v249 = vld [vmem:[#allocation2 + $0x20] sm:$0xff]
        %v250 = vld [vmem:[#allocation2 + $0x28] sm:$0xff]
        %v251 = vld [vmem:[%s2] sm:$0xff]
        %v252 = vld [vmem:[%s2 + $0x8] sm:$0xff]
        %v253 = vld [vmem:[%s2 + $0x10] sm:$0xff]
        %v254 = vld [vmem:[%s2 + $0x18] sm:$0xff]
        %256 = vset.pattern.permute.xlu0 0
        %257 = vperm.xlu0 %256, %v251
        %v258 = vpop.permute.xlu0 %257
        %261 = vset.pattern.permute.xlu0 0
        %262 = vperm.xlu0 %261, %v252
        %v263 = vpop.permute.xlu0 %262
        %266 = vset.pattern.permute.xlu0 0
        %267 = vperm.xlu0 %266, %v253
        %v268 = vpop.permute.xlu0 %267
        %271 = vset.pattern.permute.xlu0 0
        %272 = vperm.xlu0 %271, %v254
        %v273 = vpop.permute.xlu0 %272
        %vm275 = vcmask 392192
        %v277 = vsel %vm275, %v241, 0
        %v280 = vsel %vm275, %v242, 0
        %v283 = vsel %vm275, %v243, 0
        %v286 = vsel %vm275, %v244, 0
        %288 = vmatpush.msra.mxu0 0.0
        %289 = vmatpush.msra.mxu0 0.0
        %290 = vmatpush.msra.mxu0 0.0
        %291 = vmatpush.msra.mxu0 0.0
        %292 = vmatpush.msra.mxu0 0.0
        %293 = vmatpush.msra.mxu0 0.0
        %294 = vmatpush.msra.mxu0 0.0
        %295 = vmatpush.msra.mxu0 0.0
        %296 = vmatpush.msra.mxu0 0.0
        %297 = vmatpush.msra.mxu0 0.0
        %298 = vmatpush.msra.mxu0 %v250
        %299 = vmatpush.msra.mxu0 %v249
        %300 = vmatpush.msra.mxu0 %v248
        %301 = vmatpush.msra.mxu0 %v247
        %302 = vmatpush.msra.mxu0 %v246
        %303 = vmatpush.msra.mxu0 %v245
        %304 = vmatmul.f32.gmra.mxu0 %v277
        %v305 = vpop.f32.mrf.mxu0
        %v306 = vadd.f32 %v258, %v305
        %307 = vmatmul.f32.gmra.mxu0 %v280
        %v308 = vpop.f32.mrf.mxu0
        %v309 = vadd.f32 %v263, %v308
        %310 = vmatmul.f32.gmra.mxu0 %v283
        %v311 = vpop.f32.mrf.mxu0
        %v312 = vadd.f32 %v268, %v311
        %313 = vmatmul.f32.gmra.mxu0 %v286
        %v314 = vpop.f32.mrf.mxu0
        %v315 = vadd.f32 %v273, %v314
        %316 = vdwg.mxu0
        %317 = vst [vmem:[%s190] sm:$0xff] %v306
        %318 = vst [vmem:[%s190 + $0x8] sm:$0xff] %v309
        %319 = vst [vmem:[%s190 + $0x10] sm:$0xff] %v312
        %320 = vst [vmem:[%s190 + $0x18] sm:$0xff] %v315
        %s321 = sand.u32 %s96, 1
        %s322 = scalar_lea.sflag [#allocation5], %s321
        %s323 = sand.u32 %s96, 1
        %s324 = smul.addr %s323, 32
        %s325 = scalar_lea.vmem [#allocation6], %s324
        // Predicated region
        $region37: #{tpu_custom_call.1} parent=31 // pred_check
          %p326 = pneg %p106
        $region38: #{tpu_custom_call.1} parent=31 // pred_check_branch
          %328 = sbr.rel (%p326) target = $region40
        $region39: #{tpu_custom_call.1} parent=31 // pred_region
          %330 = vsyncadd %s322, 0
          %s331 = smul.addr %s20, 4
          %s332 = smul.addr %s331, 8
          %s333 = scalar_lea.hbm %s3, %s332
          %s334 = sshll.u32 %s325, 4
          %s335 = int_to_ptr.vmem [resolvable:$true] %s334
          %s336 = sshll.u32 %s333, 4
          %s337 = int_to_ptr.hbm [resolvable:$true] %s336
          %342 = dma.vmem_to_hbm [thread:$0]  %s335, 512, %s337, %s322, 128, 128, 8
        $region40: #{tpu_custom_call.1} parent=31 // pred_fallthru
          _
      $region32: #{tpu_custom_call.1} parent=5 // pred_fallthru
        _
      %p343 = scmp.le.s32.totalorder 2, %s15
      // Predicated region
      $region41: #{tpu_custom_call.1} parent=5 // pred_check
        %p344 = pneg %p343
      $region42: #{tpu_custom_call.1} parent=5 // pred_check_branch
        %346 = sbr.rel (%p344) target = $region44
      $region43: #{tpu_custom_call.1} parent=5 // pred_region
        %s347 = ssub.s32 %s15, 2
        // Predicated region
        $region45: #{tpu_custom_call.1} parent=43 // pred_check
          %p348 = pneg %p112
        $region46: #{tpu_custom_call.1} parent=43 // pred_check_branch
          %350 = sbr.rel (%p348) target = $region48
        $region47: #{tpu_custom_call.1} parent=43 // pred_region
          %s351 = sand.u32 %s97, 1
          %s352 = scalar_lea.sflag [#allocation5], %s351
          %s353 = sand.u32 %s97, 1
          %s354 = smul.addr %s353, 32
          %s355 = scalar_lea.vmem [#allocation6], %s354
          %357 = dma.done %s352, 512
        $region48: #{tpu_custom_call.1} parent=43 // pred_fallthru
          _
      $region44: #{tpu_custom_call.1} parent=5 // pred_fallthru
        _
    $region6: #{tpu_custom_call.1} parent=1 // loop_footer
      %s19 = sadd.s32 1, %s15
    $region7: #{tpu_custom_call.1} parent=1 // loop_footer_branch
      %14 = sbr.rel target = $region3
    $region8: #{tpu_custom_call.1} parent=1 // loop_exit
      _
    %358 = vsyncpa [#allocation4], 1
    %s359 = scalar_lea.sflag [#allocation4], 1
    %360 = vsyncpa %s359, 1
    %361 = vsyncpa [#allocation5], 1
    %s362 = scalar_lea.sflag [#allocation5], 1
    %363 = vsyncpa %s362, 1

</llo_original>
